<compile_context>
chip_gen: v5e
topology: v5e:2x2
jax: 0.10.0
libtpu: 0.0.40
codegen_flags: <defaults>
</compile_context>

<pallas_src>
import functools

import jax
import jax.numpy as jnp
from jax.experimental import pallas as pl
from jax.experimental.pallas import tpu as pltpu


def _conv_im2col_kernel(x_ref, w_ref, b_ref, o_ref, patch_ref, *,
                        img_w, kw_size, c_in):
    """Fused-im2col conv GEMM for one batch element (transposed, lane-dense).

    x_ref:     (C_in, H*W)            NCHW activation slice, spatial flattened
    w_ref:     (C_out, KH*KW*C_in)    weights, tap-major / channel-minor
    b_ref:     (C_out, 1)             bias (f32)
    o_ref:     (C_out, H*W)           output tile; valid region sliced outside
    patch_ref: (KH*KW*C_in, H*W)      VMEM scratch: stacked shifted activations
    """
    x = x_ref[...]
    hw = x.shape[-1]
    n_taps = patch_ref.shape[0] // c_in

    # Build the im2col patch matrix in VMEM using lane rotations only: for tap
    # k = kh*KW + kw, the input needed at flattened output position q = ho*W+wo
    # is x[:, q + s] with s = kh*W + kw, i.e. the tile rotated left by s lanes.
    # Wrapped/contaminated lanes only land in invalid output rows/cols, which
    # are sliced off in the wrapper.
    for k in range(n_taps):                       # static, fully unrolled
        kh, kw = k // kw_size, k % kw_size
        s = kh * img_w + kw
        xs = x if s == 0 else pltpu.roll(x, shift=hw - s, axis=1)
        patch_ref[pl.ds(k * c_in, c_in), :] = xs

    # Single MXU matmul over the full contraction K = KH*KW*C_in, f32 accum.
    acc = jnp.dot(w_ref[...], patch_ref[...],
                  preferred_element_type=jnp.float32)
    o_ref[...] = (acc + b_ref[...]).astype(o_ref.dtype)


def dummy_conv_forward(x, weight, bias):
    """Conv2d forward (stride=1, padding=0, dilation=1, groups=1). NCHW in/out."""
    N, C_in, H, W = x.shape
    C_out, _, KH, KW = weight.shape
    Ho, Wo = H - KH + 1, W - KW + 1
    HW = H * W
    K = KH * KW * C_in

    # Layout plumbing only (the x reshape is contiguous => no data movement).
    x_flat = x.reshape(N, C_in, HW)
    # w_mat[o, (kh*KW + kw)*C_in + c] = weight[o, c, kh, kw]  (matches patch rows)
    w_mat = jnp.transpose(weight, (0, 2, 3, 1)).reshape(C_out, K)
    b_col = bias.reshape(C_out, 1).astype(jnp.float32)

    kernel = functools.partial(_conv_im2col_kernel,
                               img_w=W, kw_size=KW, c_in=C_in)

    out_flat = pl.pallas_call(
        kernel,
        out_shape=jax.ShapeDtypeStruct((N, C_out, HW), x.dtype),
        grid=(N,),
        in_specs=[
            pl.BlockSpec((None, C_in, HW), lambda n: (n, 0, 0)),
            pl.BlockSpec((C_out, K), lambda n: (0, 0)),   # VMEM-resident
            pl.BlockSpec((C_out, 1), lambda n: (0, 0)),   # VMEM-resident
        ],
        out_specs=pl.BlockSpec((None, C_out, HW), lambda n: (n, 0, 0)),
        scratch_shapes=[pltpu.VMEM((K, HW), jnp.float32)],
        compiler_params=pltpu.CompilerParams(
            dimension_semantics=("parallel",)),
    )(x_flat, w_mat, b_col)

    # (N, C_out, H*W) is already channel-major: free reshape to (N, C_out, H, W)
    # and slice off the (KH-1)/(KW-1) invalid border rows/cols -> NCHW output.
    return out_flat.reshape(N, C_out, H, W)[:, :, :Ho, :Wo]


if __name__ == "__main__":
    # DummyConv(in_channels=4, out_channels=8, kernels=3, bias=True)
    N, C_in, C_out, KH, KW, H, W = 2, 4, 8, 3, 3, 16, 16

    key = jax.random.PRNGKey(0)
    kx, kw_, kb = jax.random.split(key, 3)

    # Deterministic PyTorch-style init: uniform(-1/sqrt(fan_in), +1/sqrt(fan_in)).
    fan_in = C_in * KH * KW
    bound = 1.0 / jnp.sqrt(jnp.float32(fan_in))
    weight = jax.random.uniform(kw_, (C_out, C_in, KH, KW), jnp.float32,
                                -bound, bound)
    bias = jax.random.uniform(kb, (C_out,), jnp.float32, -bound, bound)
    x = jax.random.normal(kx, (N, C_in, H, W), jnp.float32)

    fwd = jax.jit(dummy_conv_forward)
    out = jax.block_until_ready(fwd(x, weight, bias))

    # Sanity check against XLA's conv.
    ref = jax.lax.conv_general_dilated(
        x, weight, window_strides=(1, 1), padding="VALID",
        dimension_numbers=("NCHW", "OIHW", "NCHW"),
    ) + bias.reshape(1, C_out, 1, 1)
    assert out.shape == (N, C_out, H - KH + 1, W - KW + 1), out.shape
    assert jnp.allclose(out, ref, atol=1e-4, rtol=1e-4), float(
        jnp.max(jnp.abs(out - ref)))

    print("KERNEL_OK")
</pallas_src>

<mosaic_0001>
module attributes {stable_mosaic.version = 11 : i64} {
  func.func @_conv_im2col_kernel(%arg0: i32, %arg1: memref<1x4x256xf32, #tpu.memory_space<vmem>>, %arg2: memref<8x36xf32, #tpu.memory_space<vmem>>, %arg3: memref<8x1xf32, #tpu.memory_space<vmem>>, %arg4: memref<1x8x256xf32, #tpu.memory_space<vmem>>, %arg5: memref<36x256xf32, #tpu.memory_space<vmem>>) attributes {dimension_semantics = [#tpu.dimension_semantics<parallel>], iteration_bounds = array<i64: 2>, scalar_prefetch = 0 : i64, scratch_operands = 1 : i64, tpu.core_type = #tpu.core_type<tc>, window_params = [{transform_indices = @transform_0, window_bounds = array<i64: 1, 4, 256>}, {pipeline_mode = #tpu.pipeline_mode<synchronous>, transform_indices = @transform_1, window_bounds = array<i64: 8, 36>}, {pipeline_mode = #tpu.pipeline_mode<synchronous>, transform_indices = @transform_2, window_bounds = array<i64: 8, 1>}, {transform_indices = @transform_3, window_bounds = array<i64: 1, 8, 256>}]} {
    %c0 = arith.constant 0 : index
    %c0_0 = arith.constant 0 : index
    %c0_1 = arith.constant 0 : index
    %0 = vector.load %arg1[%c0, %c0_0, %c0_1] : memref<1x4x256xf32, #tpu.memory_space<vmem>>, vector<1x4x256xf32>
    %1 = vector.shape_cast %0 : vector<1x4x256xf32> to vector<4x256xf32>
    %c0_2 = arith.constant 0 : index
    %c0_3 = arith.constant 0 : index
    %2 = vector.load %arg5[%c0_2, %c0_3] : memref<36x256xf32, #tpu.memory_space<vmem>>, vector<4x256xf32>
    tpu.vector_store %arg5[%c0_2, %c0_3], %1 {strides = array<i32>} : memref<36x256xf32, #tpu.memory_space<vmem>>, vector<4x256xf32>,
    %c255_i32 = arith.constant 255 : i32
    %3 = tpu.dynamic_rotate %1 by %c255_i32 dim 1 : vector<4x256xf32>, i32 -> vector<4x256xf32>
    %c4 = arith.constant 4 : index
    %c0_4 = arith.constant 0 : index
    %4 = vector.load %arg5[%c4, %c0_4] : memref<36x256xf32, #tpu.memory_space<vmem>>, vector<4x256xf32>
    tpu.vector_store %arg5[%c4, %c0_4], %3 {strides = array<i32>} : memref<36x256xf32, #tpu.memory_space<vmem>>, vector<4x256xf32>,
    %c254_i32 = arith.constant 254 : i32
    %5 = tpu.dynamic_rotate %1 by %c254_i32 dim 1 : vector<4x256xf32>, i32 -> vector<4x256xf32>
    %c8 = arith.constant 8 : index
    %c0_5 = arith.constant 0 : index
    %6 = vector.load %arg5[%c8, %c0_5] : memref<36x256xf32, #tpu.memory_space<vmem>>, vector<4x256xf32>
    tpu.vector_store %arg5[%c8, %c0_5], %5 {strides = array<i32>} : memref<36x256xf32, #tpu.memory_space<vmem>>, vector<4x256xf32>,
    %c240_i32 = arith.constant 240 : i32
    %7 = tpu.dynamic_rotate %1 by %c240_i32 dim 1 : vector<4x256xf32>, i32 -> vector<4x256xf32>
    %c12 = arith.constant 12 : index
    %c0_6 = arith.constant 0 : index
    %8 = vector.load %arg5[%c12, %c0_6] : memref<36x256xf32, #tpu.memory_space<vmem>>, vector<4x256xf32>
    tpu.vector_store %arg5[%c12, %c0_6], %7 {strides = array<i32>} : memref<36x256xf32, #tpu.memory_space<vmem>>, vector<4x256xf32>,
    %c239_i32 = arith.constant 239 : i32
    %9 = tpu.dynamic_rotate %1 by %c239_i32 dim 1 : vector<4x256xf32>, i32 -> vector<4x256xf32>
    %c16 = arith.constant 16 : index
    %c0_7 = arith.constant 0 : index
    %10 = vector.load %arg5[%c16, %c0_7] : memref<36x256xf32, #tpu.memory_space<vmem>>, vector<4x256xf32>
    tpu.vector_store %arg5[%c16, %c0_7], %9 {strides = array<i32>} : memref<36x256xf32, #tpu.memory_space<vmem>>, vector<4x256xf32>,
    %c238_i32 = arith.constant 238 : i32
    %11 = tpu.dynamic_rotate %1 by %c238_i32 dim 1 : vector<4x256xf32>, i32 -> vector<4x256xf32>
    %c20 = arith.constant 20 : index
    %c0_8 = arith.constant 0 : index
    %12 = vector.load %arg5[%c20, %c0_8] : memref<36x256xf32, #tpu.memory_space<vmem>>, vector<4x256xf32>
    tpu.vector_store %arg5[%c20, %c0_8], %11 {strides = array<i32>} : memref<36x256xf32, #tpu.memory_space<vmem>>, vector<4x256xf32>,
    %c224_i32 = arith.constant 224 : i32
    %13 = tpu.dynamic_rotate %1 by %c224_i32 dim 1 : vector<4x256xf32>, i32 -> vector<4x256xf32>
    %c24 = arith.constant 24 : index
    %c0_9 = arith.constant 0 : index
    %14 = vector.load %arg5[%c24, %c0_9] : memref<36x256xf32, #tpu.memory_space<vmem>>, vector<4x256xf32>
    tpu.vector_store %arg5[%c24, %c0_9], %13 {strides = array<i32>} : memref<36x256xf32, #tpu.memory_space<vmem>>, vector<4x256xf32>,
    %c223_i32 = arith.constant 223 : i32
    %15 = tpu.dynamic_rotate %1 by %c223_i32 dim 1 : vector<4x256xf32>, i32 -> vector<4x256xf32>
    %c28 = arith.constant 28 : index
    %c0_10 = arith.constant 0 : index
    %16 = vector.load %arg5[%c28, %c0_10] : memref<36x256xf32, #tpu.memory_space<vmem>>, vector<4x256xf32>
    tpu.vector_store %arg5[%c28, %c0_10], %15 {strides = array<i32>} : memref<36x256xf32, #tpu.memory_space<vmem>>, vector<4x256xf32>,
    %c222_i32 = arith.constant 222 : i32
    %17 = tpu.dynamic_rotate %1 by %c222_i32 dim 1 : vector<4x256xf32>, i32 -> vector<4x256xf32>
    %c32 = arith.constant 32 : index
    %c0_11 = arith.constant 0 : index
    %18 = vector.load %arg5[%c32, %c0_11] : memref<36x256xf32, #tpu.memory_space<vmem>>, vector<4x256xf32>
    tpu.vector_store %arg5[%c32, %c0_11], %17 {strides = array<i32>} : memref<36x256xf32, #tpu.memory_space<vmem>>, vector<4x256xf32>,
    %c0_12 = arith.constant 0 : index
    %c0_13 = arith.constant 0 : index
    %19 = vector.load %arg2[%c0_12, %c0_13] : memref<8x36xf32, #tpu.memory_space<vmem>>, vector<8x36xf32>
    %c0_14 = arith.constant 0 : index
    %c0_15 = arith.constant 0 : index
    %20 = vector.load %arg5[%c0_14, %c0_15] : memref<36x256xf32, #tpu.memory_space<vmem>>, vector<36x256xf32>
    %cst = arith.constant dense<0.000000e+00> : vector<8x256xf32>
    %21 = tpu.matmul %19, %20, %cst {dimension_numbers = #tpu.dot_dimension_numbers<[1], [0], [0], [1], [0, 0, 1, 1], [], []>} : vector<8x36xf32>, vector<36x256xf32>, vector<8x256xf32> -> vector<8x256xf32>
    %c0_16 = arith.constant 0 : index
    %c0_17 = arith.constant 0 : index
    %22 = vector.load %arg3[%c0_16, %c0_17] : memref<8x1xf32, #tpu.memory_space<vmem>>, vector<8x1xf32>
    %23 = vector.broadcast %22 : vector<8x1xf32> to vector<8x256xf32>
    %24 = arith.addf %21, %23 : vector<8x256xf32>
    %c0_18 = arith.constant 0 : index
    %c0_19 = arith.constant 0 : index
    %c0_20 = arith.constant 0 : index
    %25 = vector.load %arg4[%c0_18, %c0_19, %c0_20] : memref<1x8x256xf32, #tpu.memory_space<vmem>>, vector<1x8x256xf32>
    %26 = vector.shape_cast %25 : vector<1x8x256xf32> to vector<8x256xf32>
    %27 = vector.shape_cast %24 : vector<8x256xf32> to vector<1x8x256xf32>
    tpu.vector_store %arg4[%c0_18, %c0_19, %c0_20], %27 {strides = array<i32>} : memref<1x8x256xf32, #tpu.memory_space<vmem>>, vector<1x8x256xf32>,
    return
  }
  func.func @transform_0(%arg0: i32) -> (i32, i32, i32) {
    %c0_i32 = arith.constant 0 : i32
    %c0_i32_0 = arith.constant 0 : i32
    %c0_i32_1 = arith.constant 0 : i32
    return %arg0, %c0_i32, %c0_i32_0 : i32, i32, i32
  }
  func.func @transform_1(%arg0: i32) -> (i32, i32) {
    %c0_i32 = arith.constant 0 : i32
    %c0_i32_0 = arith.constant 0 : i32
    %c0_i32_1 = arith.constant 0 : i32
    return %c0_i32, %c0_i32_0 : i32, i32
  }
  func.func @transform_2(%arg0: i32) -> (i32, i32) {
    %c0_i32 = arith.constant 0 : i32
    %c0_i32_0 = arith.constant 0 : i32
    %c0_i32_1 = arith.constant 0 : i32
    return %c0_i32, %c0_i32_0 : i32, i32
  }
  func.func @transform_3(%arg0: i32) -> (i32, i32, i32) {
    %c0_i32 = arith.constant 0 : i32
    %c0_i32_0 = arith.constant 0 : i32
    %c0_i32_1 = arith.constant 0 : i32
    return %arg0, %c0_i32, %c0_i32_0 : i32, i32, i32
  }
}

</mosaic_0001>

<llo_original>
// kernel: dummy_conv_forward.1
$region0: #{dummy_conv_forward.1}
  #allocation0 [shape = 'u32[]', space=smem, size = 0x4, offset = 0x4, fixed_abs, tag = 'smem constant byte address 0x4 - core index']
  #allocation1 [shape = 'u32[72,128]{1,0:T(1,128)}', space=vmem, size = 0x9000, scoped, tag = 'internal scratch']
  #allocation2 [shape = 'f32[36,256]{1,0:T(8,128)}', space=vmem, size = 0xa000, scoped, tag = 'scratch operand']
  %s0 = inlined_call_operand.vmem [shape: f32[2,4,256], index: 0, kind: input, shape index: {}]
  %s1 = inlined_call_operand.vmem [shape: f32[8,36], index: 1, kind: input, shape index: {}]
  %s2 = inlined_call_operand.vmem [shape: f32[8,1], index: 2, kind: input, shape index: {}]
  %s3 = inlined_call_operand.vmem [shape: f32[2,8,256], index: 3, kind: output, shape index: {}]
  %s4 = sld [smem:[#allocation0]]
  $region45: #{dummy_conv_forward.1} parent=0
    _
  %s6 = ssub.s32 1, %s4
  %s7 = scalar_select 0, %s6, %s4
  loop: start=0, step=1, limit=4
  $region2: #{dummy_conv_forward.1} parent=0 // loop_pre_header
    _
  $region3: #{dummy_conv_forward.1} parent=0 // loop_header
    %s9 = sphi 0, %s13
    %p10 = scmp.ge.s32.totalorder %s9, 4
    %s19 = sphi 0, %s21
    %s22 = sphi 0, %s19
    %s23 = sphi 0, %s22
    %s39 = sphi 0, %s23
    %s43 = sphi 0, %s43
    %s45 = sphi 0, %s43
    %s46 = sphi 0, %s45
    %s60 = sphi 0, %s46
    %s64 = sphi 0, %s64
    %s66 = sphi 0, %s64
    %s67 = sphi 0, %s66
    %s81 = sphi 0, %s67
    %s87 = sphi 0, %s89
    %s90 = sphi 0, %s87
    %s91 = sphi 0, %s90
    %s107 = sphi 0, %s91
  $region4: #{dummy_conv_forward.1} parent=0 // loop_header_branch
    %12 = sbr.rel (%p10) target = $region8
  $region5: #{dummy_conv_forward.1} parent=0 // loop_body
    %s14 = ssub.s32 %s9, 1
    %s15 = ssub.s32 %s9, 2
    %s16 = sadd.s32 %s9, 1
    %s17 = ssub.s32 %s9, %s16
    %p18 = scmp.eq.s32.totalorder %s17, 0
    %s20 = sadd.s32 %s19, 1
    %s21 = scalar_select %p18, %s19, %s20
    %p24 = pneg %p18
    %p25 = scmp.eq.s32.totalorder %s9, 1
    %p26 = por %p24, %p25
    %p27 = scmp.ne.s32.totalorder %s19, %s22
    %p28 = scmp.eq.s32.totalorder %s9, 0
    %p29 = por %p27, %p28
    %p30 = scmp.ne.s32.totalorder %s19, %s22
    %p31 = scmp.eq.s32.totalorder %s14, 1
    %p32 = por %p30, %p31
    %p33 = scmp.ne.s32.totalorder %s22, %s23
    %p34 = scmp.eq.s32.totalorder %s14, 0
    %p35 = por %p33, %p34
    %p36 = scmp.ne.s32.totalorder %s22, %s23
    %p37 = scmp.eq.s32.totalorder %s15, 1
    %p38 = por %p36, %p37
    %p40 = scmp.ne.s32.totalorder %s23, %s39
    %p41 = scmp.eq.s32.totalorder %s15, 0
    %p42 = por %p40, %p41
    %s44 = sadd.s32 %s43, 1
    %p47 = scmp.eq.s32.totalorder %s9, 1
    %p48 = scmp.ne.s32.totalorder %s43, %s45
    %p49 = scmp.eq.s32.totalorder %s9, 0
    %p50 = por %p48, %p49
    %p51 = scmp.ne.s32.totalorder %s43, %s45
    %p52 = scmp.eq.s32.totalorder %s14, 1
    %p53 = por %p51, %p52
    %p54 = scmp.ne.s32.totalorder %s45, %s46
    %p55 = scmp.eq.s32.totalorder %s14, 0
    %p56 = por %p54, %p55
    %p57 = scmp.ne.s32.totalorder %s45, %s46
    %p58 = scmp.eq.s32.totalorder %s15, 1
    %p59 = por %p57, %p58
    %p61 = scmp.ne.s32.totalorder %s46, %s60
    %p62 = scmp.eq.s32.totalorder %s15, 0
    %p63 = por %p61, %p62
    %s65 = sadd.s32 %s64, 1
    %p68 = scmp.eq.s32.totalorder %s9, 1
    %p69 = scmp.ne.s32.totalorder %s64, %s66
    %p70 = scmp.eq.s32.totalorder %s9, 0
    %p71 = por %p69, %p70
    %p72 = scmp.ne.s32.totalorder %s64, %s66
    %p73 = scmp.eq.s32.totalorder %s14, 1
    %p74 = por %p72, %p73
    %p75 = scmp.ne.s32.totalorder %s66, %s67
    %p76 = scmp.eq.s32.totalorder %s14, 0
    %p77 = por %p75, %p76
    %p78 = scmp.ne.s32.totalorder %s66, %s67
    %p79 = scmp.eq.s32.totalorder %s15, 1
    %p80 = por %p78, %p79
    %p82 = scmp.ne.s32.totalorder %s67, %s81
    %p83 = scmp.eq.s32.totalorder %s15, 0
    %p84 = por %p82, %p83
    %s85 = ssub.s32 %s9, %s16
    %p86 = scmp.eq.s32.totalorder %s85, 0
    %s88 = sadd.s32 %s87, 1
    %s89 = scalar_select %p86, %s87, %s88
    %p92 = pneg %p86
    %p93 = scmp.eq.s32.totalorder %s9, 1
    %p94 = por %p92, %p93
    %p95 = scmp.ne.s32.totalorder %s87, %s90
    %p96 = scmp.eq.s32.totalorder %s9, 0
    %p97 = por %p95, %p96
    %p98 = scmp.ne.s32.totalorder %s87, %s90
    %p99 = scmp.eq.s32.totalorder %s14, 1
    %p100 = por %p98, %p99
    %p101 = scmp.ne.s32.totalorder %s90, %s91
    %p102 = scmp.eq.s32.totalorder %s14, 0
    %p103 = por %p101, %p102
    %p104 = scmp.ne.s32.totalorder %s90, %s91
    %p105 = scmp.eq.s32.totalorder %s15, 1
    %p106 = por %p104, %p105
    %p108 = scmp.ne.s32.totalorder %s91, %s107
    %p109 = scmp.eq.s32.totalorder %s15, 0
    %p110 = por %p108, %p109
    %p111 = scmp.le.s32.totalorder 1, %s9
    %p112 = scmp.lt.s32.totalorder %s9, 3
    %p113 = pnand %p111, %p112
    %p114 = pneg %p113
    // Predicated region
    $region9: #{dummy_conv_forward.1} parent=5 // pred_check
      _
    $region10: #{dummy_conv_forward.1} parent=5 // pred_check_branch
      %116 = sbr.rel (%p113) target = $region12
    $region11: #{dummy_conv_forward.1} parent=5 // pred_region
      %s117 = ssub.s32 %s9, 1
      // Predicated region
      $region13: #{dummy_conv_forward.1} parent=11 // pred_check
        %p118 = pneg %p56
      $region14: #{dummy_conv_forward.1} parent=11 // pred_check_branch
        %120 = sbr.rel (%p118) target = $region16
      $region15: #{dummy_conv_forward.1} parent=11 // pred_region
        _
      $region16: #{dummy_conv_forward.1} parent=11 // pred_fallthru
        _
      // Predicated region
      $region17: #{dummy_conv_forward.1} parent=11 // pred_check
        %p121 = pneg %p77
      $region18: #{dummy_conv_forward.1} parent=11 // pred_check_branch
        %123 = sbr.rel (%p121) target = $region20
      $region19: #{dummy_conv_forward.1} parent=11 // pred_region
        _
      $region20: #{dummy_conv_forward.1} parent=11 // pred_fallthru
        _
    $region12: #{dummy_conv_forward.1} parent=5 // pred_fallthru
      _
    %p124 = scmp.lt.s32.totalorder %s9, 2
    // Predicated region
    $region21: #{dummy_conv_forward.1} parent=5 // pred_check
      %p125 = pneg %p124
    $region22: #{dummy_conv_forward.1} parent=5 // pred_check_branch
      %127 = sbr.rel (%p125) target = $region24
    $region23: #{dummy_conv_forward.1} parent=5 // pred_region
      // Predicated region
      $region25: #{dummy_conv_forward.1} parent=23 // pred_check
        %p128 = pneg %p29
      $region26: #{dummy_conv_forward.1} parent=23 // pred_check_branch
        %130 = sbr.rel (%p128) target = $region28
      $region27: #{dummy_conv_forward.1} parent=23 // pred_region
        %p131 = scmp.lt.s32.totalorder %s9, 1
        %s132 = scalar_select %p131, %s9, 1
        %s133 = smul.addr %s132, 2
        %s134 = smul.addr %s133, 4
        %s135 = scalar_lea.vmem %s0, %s134
      $region28: #{dummy_conv_forward.1} parent=23 // pred_fallthru
        _
    $region24: #{dummy_conv_forward.1} parent=5 // pred_fallthru
      _
    %p136 = scmp.le.s32.totalorder 1, %s9
    %p137 = scmp.lt.s32.totalorder %s9, 3
    %p138 = pnand %p136, %p137
    %p139 = pneg %p138
    // Predicated region
    $region29: #{dummy_conv_forward.1} parent=5 // pred_check
      _
    $region30: #{dummy_conv_forward.1} parent=5 // pred_check_branch
      %141 = sbr.rel (%p138) target = $region32
    $region31: #{dummy_conv_forward.1} parent=5 // pred_region
      %s142 = ssub.s32 %s9, 1
      %p143 = scmp.lt.s32.totalorder %s14, 1
      %s144 = scalar_select %p143, %s14, 1
      %s145 = smul.addr %s144, 2
      %s146 = smul.addr %s145, 4
      %s147 = scalar_lea.vmem %s0, %s146
      %p148 = pneg %p35
      %p149 = pneg %p32
      %p150 = pneg %p56
      %p151 = pneg %p53
      %p152 = pneg %p77
      %p153 = pneg %p74
      %p154 = pneg %p103
      %p155 = pneg %p100
      %p156 = scmp.lt.s32.totalorder %s14, 1
      %s157 = scalar_select %p156, %s14, 1
      %s158 = smul.addr %s157, 2
      %s159 = smul.addr %s158, 8
      %s160 = scalar_lea.vmem %s3, %s159
      %p161 = scmp.lt.s32.totalorder %s14, 1
      %s162 = scalar_select %p161, %s14, 1
      %s163 = smul.addr %s162, 2
      %s164 = smul.addr %s163, 4
      %s165 = scalar_lea.vmem %s0, %s164
      %p166 = scmp.lt.s32.totalorder %s14, 1
      %s167 = scalar_select %p166, %s14, 1
      %s168 = smul.addr %s167, 2
      %s169 = smul.addr %s168, 8
      %s170 = scalar_lea.vmem %s3, %s169
      %v171 = vld [vmem:[%s165] sm:$0xff]
      %173 = vst [vmem:[#allocation1] ss:$2 sm:$0xff] %v171
      %v174 = vld.sshfl [vmem:[#allocation1] sm:$0xff pattern:$0x75316420]
      %v175 = vld.sshfl [vmem:[#allocation1 + $0x8] sm:$0xff pattern:$0x75316420]
      %178 = vst [vmem:[#allocation2] sm:$0xf] %v174
      %179 = vst [vmem:[#allocation2 + $0x8] sm:$0xf] %v175
      %180 = vst [vmem:[#allocation1] ss:$2 sm:$0xff] %v171
      %v181 = vld.sshfl [vmem:[#allocation1] sm:$0xff pattern:$0x75316420]
      %v182 = vld.sshfl [vmem:[#allocation1 + $0x8] sm:$0xff pattern:$0x75316420]
      %185 = vrot.lane.b32.xlu0 %v181, 127
      %v186 = vpop.permute.xlu0 %185
      %187 = vrot.lane.b32.xlu0 %v182, 127
      %v188 = vpop.permute.xlu0 %187
      %v189 = vlaneseq
      %v190 = vand.u32 %v189, 127
      %vm191 = vcmp.lt.s32.totalorder %v190, 127
      %v192 = vsel %vm191, %v186, %v188
      %v193 = vsel %vm191, %v188, %v186
      %v196 = vrot.slane %v192, 4
      %v197 = vrot.slane %v193, 4
      %200 = vst [vmem:[#allocation2] sm:$0xf0] %v196
      %201 = vst [vmem:[#allocation2 + $0x8] sm:$0xf0] %v197
      %202 = vst [vmem:[#allocation1] ss:$2 sm:$0xff] %v171
      %v203 = vld.sshfl [vmem:[#allocation1] sm:$0xff pattern:$0x75316420]
      %v204 = vld.sshfl [vmem:[#allocation1 + $0x8] sm:$0xff pattern:$0x75316420]
      %207 = vrot.lane.b32.xlu0 %v203, 126
      %v208 = vpop.permute.xlu0 %207
      %209 = vrot.lane.b32.xlu0 %v204, 126
      %v210 = vpop.permute.xlu0 %209
      %vm211 = vcmp.lt.s32.totalorder %v190, 126
      %v212 = vsel %vm211, %v208, %v210
      %v213 = vsel %vm211, %v210, %v208
      %214 = vst [vmem:[#allocation2 + $0x10] sm:$0xf] %v212
      %215 = vst [vmem:[#allocation2 + $0x18] sm:$0xf] %v213
      %216 = vst [vmem:[#allocation1] ss:$2 sm:$0xff] %v171
      %v217 = vld.sshfl [vmem:[#allocation1] sm:$0xff pattern:$0x75316420]
      %v218 = vld.sshfl [vmem:[#allocation1 + $0x8] sm:$0xff pattern:$0x75316420]
      %221 = vrot.lane.b32.xlu0 %v217, 112
      %v222 = vpop.permute.xlu0 %221
      %223 = vrot.lane.b32.xlu0 %v218, 112
      %v224 = vpop.permute.xlu0 %223
      %vm225 = vcmp.lt.s32.totalorder %v190, 112
      %v226 = vsel %vm225, %v222, %v224
      %v227 = vsel %vm225, %v224, %v222
      %v230 = vrot.slane %v226, 4
      %v231 = vrot.slane %v227, 4
      %234 = vst [vmem:[#allocation2 + $0x10] sm:$0xf0] %v230
      %235 = vst [vmem:[#allocation2 + $0x18] sm:$0xf0] %v231
      %236 = vst [vmem:[#allocation1] ss:$2 sm:$0xff] %v171
      %v237 = vld.sshfl [vmem:[#allocation1] sm:$0xff pattern:$0x75316420]
      %v238 = vld.sshfl [vmem:[#allocation1 + $0x8] sm:$0xff pattern:$0x75316420]
      %241 = vrot.lane.b32.xlu0 %v237, 111
      %v242 = vpop.permute.xlu0 %241
      %243 = vrot.lane.b32.xlu0 %v238, 111
      %v244 = vpop.permute.xlu0 %243
      %vm245 = vcmp.lt.s32.totalorder %v190, 111
      %v246 = vsel %vm245, %v242, %v244
      %v247 = vsel %vm245, %v244, %v242
      %248 = vst [vmem:[#allocation2 + $0x20] sm:$0xf] %v246
      %249 = vst [vmem:[#allocation2 + $0x28] sm:$0xf] %v247
      %250 = vst [vmem:[#allocation1] ss:$2 sm:$0xff] %v171
      %v251 = vld.sshfl [vmem:[#allocation1] sm:$0xff pattern:$0x75316420]
      %v252 = vld.sshfl [vmem:[#allocation1 + $0x8] sm:$0xff pattern:$0x75316420]
      %255 = vrot.lane.b32.xlu0 %v251, 110
      %v256 = vpop.permute.xlu0 %255
      %257 = vrot.lane.b32.xlu0 %v252, 110
      %v258 = vpop.permute.xlu0 %257
      %vm259 = vcmp.lt.s32.totalorder %v190, 110
      %v260 = vsel %vm259, %v256, %v258
      %v261 = vsel %vm259, %v258, %v256
      %v264 = vrot.slane %v260, 4
      %v265 = vrot.slane %v261, 4
      %268 = vst [vmem:[#allocation2 + $0x20] sm:$0xf0] %v264
      %269 = vst [vmem:[#allocation2 + $0x28] sm:$0xf0] %v265
      %270 = vst [vmem:[#allocation1] ss:$2 sm:$0xff] %v171
      %v271 = vld.sshfl [vmem:[#allocation1] sm:$0xff pattern:$0x75316420]
      %v272 = vld.sshfl [vmem:[#allocation1 + $0x8] sm:$0xff pattern:$0x75316420]
      %275 = vrot.lane.b32.xlu0 %v271, 96
      %v276 = vpop.permute.xlu0 %275
      %277 = vrot.lane.b32.xlu0 %v272, 96
      %v278 = vpop.permute.xlu0 %277
      %vm279 = vcmp.lt.s32.totalorder %v190, 96
      %v280 = vsel %vm279, %v276, %v278
      %v281 = vsel %vm279, %v278, %v276
      %282 = vst [vmem:[#allocation2 + $0x30] sm:$0xf] %v280
      %283 = vst [vmem:[#allocation2 + $0x38] sm:$0xf] %v281
      %284 = vst [vmem:[#allocation1] ss:$2 sm:$0xff] %v171
      %v285 = vld.sshfl [vmem:[#allocation1] sm:$0xff pattern:$0x75316420]
      %v286 = vld.sshfl [vmem:[#allocation1 + $0x8] sm:$0xff pattern:$0x75316420]
      %289 = vrot.lane.b32.xlu0 %v285, 95
      %v290 = vpop.permute.xlu0 %289
      %291 = vrot.lane.b32.xlu0 %v286, 95
      %v292 = vpop.permute.xlu0 %291
      %vm293 = vcmp.lt.s32.totalorder %v190, 95
      %v294 = vsel %vm293, %v290, %v292
      %v295 = vsel %vm293, %v292, %v290
      %v298 = vrot.slane %v294, 4
      %v299 = vrot.slane %v295, 4
      %302 = vst [vmem:[#allocation2 + $0x30] sm:$0xf0] %v298
      %303 = vst [vmem:[#allocation2 + $0x38] sm:$0xf0] %v299
      %304 = vst [vmem:[#allocation1] ss:$2 sm:$0xff] %v171
      %v305 = vld.sshfl [vmem:[#allocation1] sm:$0xff pattern:$0x75316420]
      %v306 = vld.sshfl [vmem:[#allocation1 + $0x8] sm:$0xff pattern:$0x75316420]
      %309 = vrot.lane.b32.xlu0 %v305, 94
      %v310 = vpop.permute.xlu0 %309
      %311 = vrot.lane.b32.xlu0 %v306, 94
      %v312 = vpop.permute.xlu0 %311
      %vm313 = vcmp.lt.s32.totalorder %v190, 94
      %v314 = vsel %vm313, %v310, %v312
      %v315 = vsel %vm313, %v312, %v310
      %316 = vst [vmem:[#allocation2 + $0x40] sm:$0xf] %v314
      %317 = vst [vmem:[#allocation2 + $0x48] sm:$0xf] %v315
      %v318 = vld [vmem:[%s1] sm:$0xff]
      %v319 = vld [vmem:[#allocation2] sm:$0xff]
      %v320 = vld [vmem:[#allocation2 + $0x8] sm:$0xff]
      %v321 = vld [vmem:[#allocation2 + $0x10] sm:$0xff]
      %v322 = vld [vmem:[#allocation2 + $0x18] sm:$0xff]
      %v323 = vld [vmem:[#allocation2 + $0x20] sm:$0xff]
      %v324 = vld [vmem:[#allocation2 + $0x28] sm:$0xff]
      %v325 = vld [vmem:[#allocation2 + $0x30] sm:$0xff]
      %v326 = vld [vmem:[#allocation2 + $0x38] sm:$0xff]
      %v327 = vld [vmem:[#allocation2 + $0x40] sm:$0xf]
      %v328 = vld [vmem:[#allocation2 + $0x48] sm:$0xf]
      %v329 = vld [vmem:[%s2] sm:$0xff]
      %331 = vset.pattern.permute.xlu0 0
      %332 = vperm.xlu0 %331, %v329
      %v333 = vpop.permute.xlu0 %332
      %vm335 = vcmask 293888
      %v337 = vsel %vm335, %v318, 0
      %vm339 = vcmask 1043456
      %v341 = vsel %vm339, %v327, 0
      %v344 = vsel %vm339, %v328, 0
      %346 = vmatpush.msra.mxu0 0.0
      %347 = vmatpush.msra.mxu0 0.0
      %348 = vmatpush.msra.mxu0 0.0
      %349 = vmatpush.msra.mxu0 0.0
      %350 = vmatpush.msra.mxu0 0.0
      %351 = vmatpush.msra.mxu0 0.0
      %352 = vmatpush.msra.mxu0 0.0
      %353 = vmatpush.msra.mxu0 0.0
      %354 = vmatpush.msra.mxu0 0.0
      %355 = vmatpush.msra.mxu0 0.0
      %356 = vmatpush.msra.mxu0 0.0
      %357 = vmatpush.msra.mxu0 %v341
      %358 = vmatpush.msra.mxu0 %v325
      %359 = vmatpush.msra.mxu0 %v323
      %360 = vmatpush.msra.mxu0 %v321
      %361 = vmatpush.msra.mxu0 %v319
      %362 = vmatmul.f32.gmra.mxu0 %v337
      %v363 = vpop.f32.mrf.mxu0
      %v364 = vadd.f32 %v333, %v363
      %365 = vdwg.mxu0
      %366 = vmatpush.msra.mxu0 0.0
      %367 = vmatpush.msra.mxu0 0.0
      %368 = vmatpush.msra.mxu0 0.0
      %369 = vmatpush.msra.mxu0 0.0
      %370 = vmatpush.msra.mxu0 0.0
      %371 = vmatpush.msra.mxu0 0.0
      %372 = vmatpush.msra.mxu0 0.0
      %373 = vmatpush.msra.mxu0 0.0
      %374 = vmatpush.msra.mxu0 0.0
      %375 = vmatpush.msra.mxu0 0.0
      %376 = vmatpush.msra.mxu0 0.0
      %377 = vmatpush.msra.mxu0 %v344
      %378 = vmatpush.msra.mxu0 %v326
      %379 = vmatpush.msra.mxu0 %v324
      %380 = vmatpush.msra.mxu0 %v322
      %381 = vmatpush.msra.mxu0 %v320
      %382 = vmatmul.f32.gmra.mxu0 %v337
      %v383 = vpop.f32.mrf.mxu0
      %v384 = vadd.f32 %v333, %v383
      %385 = vdwg.mxu0
      %386 = vst [vmem:[%s170] sm:$0xff] %v364
      %387 = vst [vmem:[%s170 + $0x8] sm:$0xff] %v384
      %p388 = scmp.lt.s32.totalorder %s14, 1
      %s389 = scalar_select %p388, %s14, 1
      %s390 = smul.addr %s389, 2
      %s391 = smul.addr %s390, 8
      %s392 = scalar_lea.vmem %s3, %s391
      // Predicated region
      $region33: #{dummy_conv_forward.1} parent=31 // pred_check
        %p393 = pneg %p100
      $region34: #{dummy_conv_forward.1} parent=31 // pred_check_branch
        %395 = sbr.rel (%p393) target = $region36
      $region35: #{dummy_conv_forward.1} parent=31 // pred_region
        _
      $region36: #{dummy_conv_forward.1} parent=31 // pred_fallthru
        _
    $region32: #{dummy_conv_forward.1} parent=5 // pred_fallthru
      _
    %p396 = scmp.le.s32.totalorder 2, %s9
    // Predicated region
    $region37: #{dummy_conv_forward.1} parent=5 // pred_check
      %p397 = pneg %p396
    $region38: #{dummy_conv_forward.1} parent=5 // pred_check_branch
      %399 = sbr.rel (%p397) target = $region40
    $region39: #{dummy_conv_forward.1} parent=5 // pred_region
      %s400 = ssub.s32 %s9, 2
      // Predicated region
      $region41: #{dummy_conv_forward.1} parent=39 // pred_check
        %p401 = pneg %p106
      $region42: #{dummy_conv_forward.1} parent=39 // pred_check_branch
        %403 = sbr.rel (%p401) target = $region44
      $region43: #{dummy_conv_forward.1} parent=39 // pred_region
        %p404 = scmp.lt.s32.totalorder %s15, 1
        %s405 = scalar_select %p404, %s15, 1
        %s406 = smul.addr %s405, 2
        %s407 = smul.addr %s406, 8
        %s408 = scalar_lea.vmem %s3, %s407
      $region44: #{dummy_conv_forward.1} parent=39 // pred_fallthru
        _
    $region40: #{dummy_conv_forward.1} parent=5 // pred_fallthru
      _
  $region6: #{dummy_conv_forward.1} parent=0 // loop_footer
    %s13 = sadd.s32 1, %s9
  $region7: #{dummy_conv_forward.1} parent=0 // loop_footer_branch
    %8 = sbr.rel target = $region3
  $region8: #{dummy_conv_forward.1} parent=0 // loop_exit
    _

</llo_original>
